<compile_context>
chip_gen: v7x
topology: tpu7x:2x2x1
jax: 0.10.0
libtpu: 0.0.40
codegen_flags: <defaults>
</compile_context>

<pallas_src>
import functools

import jax
import jax.numpy as jnp
from jax import lax
from jax.experimental import pallas as pl
from jax.experimental.pallas import tpu as pltpu


_LANE = 128


def _round_up(x, m):
    return (x + m - 1) // m * m


def _tpu_vmem_capacity():
    try:
        info = pltpu.get_tpu_info()
        cap = getattr(info, "vmem_capacity_bytes", None)
        if cap:
            return int(cap)
    except Exception:
        pass
    return 64 * 1024 * 1024          # conservative default (v7x per-core VMEM)


_VMEM_CAP = _tpu_vmem_capacity()
# Mosaic scoped-VMEM limit: leave ~16 MiB headroom below physical capacity
# (~48 MiB on v7x, ~112 MiB on v5e/v6e).
_VMEM_LIMIT = max(32 * 1024 * 1024, _VMEM_CAP - 16 * 1024 * 1024)
# Working-set budget used when picking M tiles (double-buffered blocks).
_TILE_BUDGET = max(16 * 1024 * 1024, (2 * _VMEM_CAP) // 5)
# Threshold under which the whole f32 y + bf16 output stay resident in VMEM and
# conv + BN + LeakyReLU fuse into a single pallas_call (~24 MiB v7x, ~48 MiB
# v5e/v6e).
_FUSED_BUDGET = max(16 * 1024 * 1024, (3 * _VMEM_CAP) // 8)


# ----------------------------- Pallas kernels ------------------------------ #

def _fused_convt_bn_act_kernel(cols_ref, w_ref, gamma_ref, beta_ref, o_ref,
                               y_scr, ssum_scr, ssq_scr, *,
                               inv_count, eps, negative_slope):
    """One (parity, m-tile) step of ConvT-as-GEMM with BatchNorm(train) +
    LeakyReLU fully fused.  f32 GEMM results stay resident in VMEM scratch;
    per-channel sum / sum-of-squares accumulate across all grid steps; the last
    step finalizes mean/var and writes the activated bf16 output exactly once.
    """
    nm = pl.num_programs(1)
    n_steps = pl.num_programs(0) * nm
    step = pl.program_id(0) * nm + pl.program_id(1)

    @pl.when(step == 0)
    def _init():
        ssum_scr[...] = jnp.zeros_like(ssum_scr)
        ssq_scr[...] = jnp.zeros_like(ssq_scr)

    y = jnp.dot(cols_ref[0], w_ref[0], preferred_element_type=jnp.float32)
    y_scr[step] = y
    ssum_scr[...] += jnp.sum(y, axis=0, keepdims=True)       # (1, Cp)
    ssq_scr[...] += jnp.sum(y * y, axis=0, keepdims=True)    # (1, Cp)

    @pl.when(step == n_steps - 1)
    def _finalize():
        mean = ssum_scr[...] * inv_count
        var = jnp.maximum(ssq_scr[...] * inv_count - mean * mean, 0.0)
        inv_std = lax.rsqrt(var + eps)
        scale = gamma_ref[...] * inv_std                      # (1, Cp)
        shift = beta_ref[...] - mean * scale                  # (1, Cp)

        def _apply(g, carry):
            v = y_scr[g] * scale + shift                      # (tm, Cp)
            o_ref[g] = jnp.where(v >= 0.0, v,
                                 negative_slope * v).astype(o_ref.dtype)
            return carry

        lax.fori_loop(0, n_steps, _apply, 0)


def _gemm_stats_kernel(cols_ref, w_ref, y_ref, ssum_ref, ssq_ref):
    """Fallback pass 1 (layers too large to keep resident): GEMM + per-tile
    partial BN stats.  Stats come from the f32 MXU result *before* the bf16
    rounding of the stored intermediate."""
    y = jnp.dot(cols_ref[0], w_ref[0], preferred_element_type=jnp.float32)
    y_ref[0] = y.astype(y_ref.dtype)
    ssum_ref[0] = jnp.sum(y, axis=0, keepdims=True)
    ssq_ref[0] = jnp.sum(y * y, axis=0, keepdims=True)


def _bn_leakyrelu_kernel(y_ref, scale_ref, shift_ref, o_ref, *, negative_slope):
    """Fallback pass 2: y*scale + shift followed by LeakyReLU over M tiles."""
    v = y_ref[0].astype(jnp.float32) * scale_ref[...] + shift_ref[...]
    o_ref[0] = jnp.where(v >= 0.0, v, negative_slope * v).astype(o_ref.dtype)


def _gemm_tanh_kernel(cols_ref, w_ref, o_ref):
    """Final output conv: MXU GEMM with tanh fused into the epilogue (EUP)."""
    y = jnp.dot(cols_ref[0], w_ref[0], preferred_element_type=jnp.float32)
    o_ref[0] = jnp.tanh(y).astype(o_ref.dtype)


# --------------------------- layout glue (XLA) ----------------------------- #

def _first_layer_decomp(x_nhwc, weight, compute_dtype):
    """1x1 spatial input, stride 1, padding 0: ConvTranspose2d degenerates to
    one dense GEMM per output pixel (kernel tap) with K = Cin.  The cols tensor
    is shared across all parities (shape (1, N, Cin))."""
    n, h, w, cin = x_nhwc.shape
    cin_w, cout, kh, kw = weight.shape
    assert h == 1 and w == 1 and cin == cin_w and kh == kw
    cols = x_nhwc.reshape(1, n, cin).astype(compute_dtype)
    wmats = jnp.transpose(weight, (2, 3, 0, 1)).reshape(kh * kw, cin, cout)
    return cols, wmats.astype(compute_dtype), (kh, kw), (1, 1)


def _subpixel_im2col(x_nhwc, weight, stride, padding, compute_dtype):
    """Decompose ConvTranspose2d into stride*stride dense GEMM problems (one
    per output parity); the stride-s zero dilation never reaches the MXU."""
    n, h, w, cin = x_nhwc.shape
    cin_w, cout, kh, kw = weight.shape
    assert cin == cin_w
    s, p = stride, padding
    hout = (h - 1) * s - 2 * p + kh
    wout = (w - 1) * s - 2 * p + kw
    assert hout % s == 0 and wout % s == 0, "non-uniform parity grids unsupported"
    nh, nw = hout // s, wout // s

    taps_y = {a: [(ky, (a + p - ky) // s) for ky in range(kh)
                  if (a + p - ky) % s == 0] for a in range(s)}
    taps_x = {b: [(kx, (b + p - kx) // s) for kx in range(kw)
                  if (b + p - kx) % s == 0] for b in range(s)}
    dys = [d for a in range(s) for _, d in taps_y[a]]
    dxs = [d for b in range(s) for _, d in taps_x[b]]
    pad_lo_y = max(0, -min(dys))
    pad_hi_y = max(0, (nh - 1) + max(dys) - (h - 1))
    pad_lo_x = max(0, -min(dxs))
    pad_hi_x = max(0, (nw - 1) + max(dxs) - (w - 1))

    xp = jnp.pad(x_nhwc.astype(compute_dtype),
                 ((0, 0), (pad_lo_y, pad_hi_y), (pad_lo_x, pad_hi_x), (0, 0)))
    w_f32 = weight.astype(jnp.float32)

    cols_list, w_list = [], []
    for a in range(s):
        for b in range(s):
            patches, wrows = [], []
            for ky, dy in taps_y[a]:
                for kx, dx in taps_x[b]:
                    y0, x0 = dy + pad_lo_y, dx + pad_lo_x
                    patches.append(xp[:, y0:y0 + nh, x0:x0 + nw, :])
                    wrows.append(w_f32[:, :, ky, kx])          # (Cin, Cout)
            cols = jnp.concatenate(patches, axis=-1)            # (N,nh,nw,T*Cin)
            cols_list.append(cols.reshape(n * nh * nw, -1))
            w_list.append(jnp.concatenate(wrows, axis=0))       # (T*Cin, Cout)
    k_dim = cols_list[0].shape[1]
    assert all(c.shape[1] == k_dim for c in cols_list)
    cols = jnp.stack(cols_list, axis=0)
    wmats = jnp.stack(w_list, axis=0).astype(compute_dtype)
    # TODO(synk): cols is still materialized in HBM; a tap-reduction grid axis
    # reading statically shifted windows of xp directly would remove it.
    return cols, wmats, (hout, wout), (nh, nw)


def _parity_to_nhwc(act, *, s, n, nh, nw, cout):
    """Single reshape+transpose interleaving the s*s parity sub-grids back into
    NHWC (replaces the old per-parity strided scatter loop + zeros init)."""
    m_sub = n * nh * nw
    blk = act[:, :m_sub, :cout].reshape(s, s, n, nh, nw, cout)
    return blk.transpose(2, 3, 0, 4, 1, 5).reshape(n, nh * s, nw * s, cout)


def _pick_tile_m(m_sub, k_dim, c_pad, itemsize):
    """Largest M tile (multiple of 8, capped at 512 rows to keep the fused /
    stats kernel out of the spill regime) whose double-buffered working set
    fits the generation-aware VMEM budget.  Only shrinks if genuinely forced."""
    tm = min(512, _round_up(m_sub, 8))

    def need(t):
        return (2 * t * k_dim * itemsize          # cols tiles (double-buffered)
                + 2 * t * c_pad * 4               # f32 GEMM result tiles
                + 2 * k_dim * c_pad * itemsize)   # weight blocks

    while tm > 64 and need(tm) > _TILE_BUDGET:
        tm -= 64
    while tm > 8 and need(tm) > _TILE_BUDGET:
        tm -= 8
    return max(tm, 8)


# ----------------------------- pallas drivers ------------------------------ #

def _convt_bn_act(cols, wmats, gamma, beta, *, cout, count, eps,
                  negative_slope, compute_dtype, out_dtype):
    """ConvT-as-GEMM over all parities + BatchNorm(train) + LeakyReLU.

    cols : (Pc, m_sub, K) with Pc == P or Pc == 1 (shared across parities).
    wmats: (P, K, Cout).  Returns activated output of shape (P, M_pad, Cp).
    """
    p_cols, m_sub, k_dim = cols.shape
    p_par = wmats.shape[0]
    c_pad = _round_up(cout, _LANE)
    itemsize = jnp.dtype(compute_dtype).itemsize
    out_isz = jnp.dtype(out_dtype).itemsize
    tm = _pick_tile_m(m_sub, k_dim, c_pad, itemsize)
    m_pad = _round_up(m_sub, tm)
    nm = m_pad // tm
    g_total = p_par * nm

    cols_p = jnp.pad(cols.astype(compute_dtype),
                     ((0, 0), (0, m_pad - m_sub), (0, 0)))
    w_p = jnp.pad(wmats.astype(compute_dtype),
                  ((0, 0), (0, 0), (0, c_pad - cout)))
    gamma_p = jnp.pad(gamma.astype(jnp.float32),
                      (0, c_pad - cout)).reshape(1, c_pad)
    beta_p = jnp.pad(beta.astype(jnp.float32),
                     (0, c_pad - cout)).reshape(1, c_pad)

    cols_map = ((lambda pi, mi: (0, mi, 0)) if p_cols == 1
                else (lambda pi, mi: (pi, mi, 0)))
    gemm_specs = [pl.BlockSpec((1, tm, k_dim), cols_map),
                  pl.BlockSpec((1, k_dim, c_pad), lambda pi, mi: (pi, 0, 0))]
    cost = pl.CostEstimate(
        flops=2 * p_par * m_pad * k_dim * c_pad,
        transcendentals=int(c_pad),
        bytes_accessed=int(cols_p.size * itemsize + w_p.size * itemsize
                           + p_par * m_pad * c_pad * out_isz))

    # Fused single-pass path: whole f32 y + resident bf16 output live in VMEM.
    fused_bytes = (g_total * tm * c_pad * (4 + out_isz)
                   + 2 * tm * k_dim * itemsize
                   + 2 * k_dim * c_pad * itemsize
                   + 4 * c_pad * 4)
    if fused_bytes <= _FUSED_BUDGET:
        kern = functools.partial(_fused_convt_bn_act_kernel,
                                 inv_count=1.0 / float(count), eps=float(eps),
                                 negative_slope=float(negative_slope))
        act = pl.pallas_call(
            kern,
            grid=(p_par, nm),
            in_specs=gemm_specs + [
                pl.BlockSpec((1, c_pad), lambda pi, mi: (0, 0)),
                pl.BlockSpec((1, c_pad), lambda pi, mi: (0, 0))],
            out_specs=pl.BlockSpec((g_total, tm, c_pad),
                                   lambda pi, mi: (0, 0, 0)),
            out_shape=jax.ShapeDtypeStruct((g_total, tm, c_pad), out_dtype),
            scratch_shapes=[pltpu.VMEM((g_total, tm, c_pad), jnp.float32),
                            pltpu.VMEM((1, c_pad), jnp.float32),
                            pltpu.VMEM((1, c_pad), jnp.float32)],
            compiler_params=pltpu.CompilerParams(
                dimension_semantics=("arbitrary", "arbitrary"),
                vmem_limit_bytes=_VMEM_LIMIT),
            cost_estimate=cost,
        )(cols_p, w_p, gamma_p, beta_p)
        return act.reshape(p_par, m_pad, c_pad)

    # Fallback (layers too large to keep resident): two passes with a bf16
    # intermediate; BN stats accumulated in f32 before any rounding.
    y, ssum, ssq = pl.pallas_call(
        _gemm_stats_kernel,
        grid=(p_par, nm),
        in_specs=gemm_specs,
        out_specs=[pl.BlockSpec((1, tm, c_pad), lambda pi, mi: (pi, mi, 0)),
                   pl.BlockSpec((1, 1, c_pad),
                                lambda pi, mi: (pi * nm + mi, 0, 0)),
                   pl.BlockSpec((1, 1, c_pad),
                                lambda pi, mi: (pi * nm + mi, 0, 0))],
        out_shape=[jax.ShapeDtypeStruct((p_par, m_pad, c_pad), compute_dtype),
                   jax.ShapeDtypeStruct((g_total, 1, c_pad), jnp.float32),
                   jax.ShapeDtypeStruct((g_total, 1, c_pad), jnp.float32)],
        compiler_params=pltpu.CompilerParams(
            dimension_semantics=("parallel", "parallel"),
            vmem_limit_bytes=_VMEM_LIMIT),
        cost_estimate=cost,
    )(cols_p, w_p)

    mean = jnp.sum(ssum, axis=(0, 1)) / float(count)
    var = jnp.maximum(jnp.sum(ssq, axis=(0, 1)) / float(count) - mean * mean,
                      0.0)
    inv_std = lax.rsqrt(var + eps)
    scale = (gamma_p[0] * inv_std).reshape(1, c_pad)
    shift = (beta_p[0] - mean * gamma_p[0] * inv_std).reshape(1, c_pad)

    return pl.pallas_call(
        functools.partial(_bn_leakyrelu_kernel,
                          negative_slope=float(negative_slope)),
        grid=(p_par, nm),
        in_specs=[pl.BlockSpec((1, tm, c_pad), lambda pi, mi: (pi, mi, 0)),
                  pl.BlockSpec((1, c_pad), lambda pi, mi: (0, 0)),
                  pl.BlockSpec((1, c_pad), lambda pi, mi: (0, 0))],
        out_specs=pl.BlockSpec((1, tm, c_pad), lambda pi, mi: (pi, mi, 0)),
        out_shape=jax.ShapeDtypeStruct((p_par, m_pad, c_pad), out_dtype),
        compiler_params=pltpu.CompilerParams(
            dimension_semantics=("parallel", "parallel"),
            vmem_limit_bytes=_VMEM_LIMIT),
    )(y, scale, shift)


def _convt_tanh(cols, wmats, cout, *, compute_dtype, out_dtype):
    """Final ConvTranspose2d as tiled GEMMs with tanh fused into the epilogue."""
    p_par, m_sub, k_dim = cols.shape
    c_pad = _round_up(cout, _LANE)
    itemsize = jnp.dtype(compute_dtype).itemsize
    tm = _pick_tile_m(m_sub, k_dim, c_pad, itemsize)
    m_pad = _round_up(m_sub, tm)
    nm = m_pad // tm
    cols_p = jnp.pad(cols.astype(compute_dtype),
                     ((0, 0), (0, m_pad - m_sub), (0, 0)))
    w_p = jnp.pad(wmats.astype(compute_dtype),
                  ((0, 0), (0, 0), (0, c_pad - cout)))
    return pl.pallas_call(
        _gemm_tanh_kernel,
        grid=(p_par, nm),
        in_specs=[pl.BlockSpec((1, tm, k_dim), lambda pi, mi: (pi, mi, 0)),
                  pl.BlockSpec((1, k_dim, c_pad), lambda pi, mi: (pi, 0, 0))],
        out_specs=pl.BlockSpec((1, tm, c_pad), lambda pi, mi: (pi, mi, 0)),
        out_shape=jax.ShapeDtypeStruct((p_par, m_pad, c_pad), out_dtype),
        compiler_params=pltpu.CompilerParams(
            dimension_semantics=("parallel", "parallel"),
            vmem_limit_bytes=_VMEM_LIMIT),
        cost_estimate=pl.CostEstimate(
            flops=2 * p_par * m_pad * k_dim * c_pad,
            transcendentals=p_par * m_pad * c_pad,
            bytes_accessed=int(cols_p.size * itemsize + w_p.size * itemsize
                               + p_par * m_pad * c_pad
                               * jnp.dtype(out_dtype).itemsize)),
    )(cols_p, w_p)


# ------------------------------ model forward ------------------------------ #

def dcgan_generator_block(x_nhwc, weight, gamma, beta, *, stride, padding,
                          eps=1e-5, negative_slope=0.2,
                          compute_dtype=jnp.bfloat16):
    """ConvTranspose2d(bias=False) + BatchNorm2d(training) + LeakyReLU (NHWC)."""
    n, h, w, _ = x_nhwc.shape
    cout, kh = weight.shape[1], weight.shape[2]
    if h == 1 and w == 1 and stride == 1 and padding == 0:
        # First layer: dense GEMM per output pixel, K = Cin (16x fewer FLOPs
        # and 16x less cols traffic than the zero-padded im2col lowering).
        cols, wmats, (hout, wout), (nh, nw) = _first_layer_decomp(
            x_nhwc, weight, compute_dtype)
        s_eff = kh
    else:
        cols, wmats, (hout, wout), (nh, nw) = _subpixel_im2col(
            x_nhwc, weight, stride, padding, compute_dtype)
        s_eff = stride
    act = _convt_bn_act(cols, wmats, gamma, beta, cout=cout,
                        count=n * hout * wout, eps=eps,
                        negative_slope=negative_slope,
                        compute_dtype=compute_dtype, out_dtype=compute_dtype)
    return _parity_to_nhwc(act, s=s_eff, n=n, nh=nh, nw=nw, cout=cout)


def dcgan_output_conv(x_nhwc, weight, *, stride, padding,
                      compute_dtype=jnp.bfloat16):
    """Final ConvTranspose2d(bias=False) with tanh fused into the GEMM (bf16)."""
    n = x_nhwc.shape[0]
    cout = weight.shape[1]
    cols, wmats, (hout, wout), (nh, nw) = _subpixel_im2col(
        x_nhwc, weight, stride, padding, compute_dtype)
    y = _convt_tanh(cols, wmats, cout, compute_dtype=compute_dtype,
                    out_dtype=compute_dtype)
    return _parity_to_nhwc(y, s=stride, n=n, nh=nh, nw=nw, cout=cout)


def dcgan_generator_forward(z_latent, block_params, output_weight, *,
                            negative_slope=0.2, eps=1e-5,
                            compute_dtype=jnp.bfloat16):
    """Forward of DCGanGenerator.

    z_latent     : (N, n_latent)
    block_params : list of (weight (Cin,Cout,4,4), gamma (Cout,), beta (Cout,),
                            stride, padding) per DCGanGeneratorBlock
    output_weight: (C_last, out_channel, 4, 4) of the final ConvTranspose2d
    Returns NCHW image tensor after tanh (float32).
    """
    # TODO(synk): only the default activation (LeakyReLU(0.2)) is supported;
    # output_padding/dilation/groups of ConvTranspose2d and BatchNorm
    # running-stat buffer updates are not modeled (forward uses batch stats).
    n, n_latent = z_latent.shape
    x = z_latent.reshape(n, 1, 1, n_latent)        # z[:, :, None, None] in NHWC
    for (w, g, b, s, p) in block_params:
        x = dcgan_generator_block(x, w, g, b, stride=s, padding=p, eps=eps,
                                  negative_slope=negative_slope,
                                  compute_dtype=compute_dtype)
    out = dcgan_output_conv(x, output_weight, stride=2, padding=1,
                            compute_dtype=compute_dtype)
    return jnp.transpose(out, (0, 3, 1, 2)).astype(jnp.float32)   # NCHW f32


# -------------------------------- reference -------------------------------- #

def _reference_generator(z_latent, block_params, output_weight, *,
                         negative_slope=0.2, eps=1e-5):
    """Pure-JAX f32 reference with the PyTorch module semantics."""
    def convt(x, wt, stride, padding):
        cin, cout, kh, kw = wt.shape
        w_conv = jnp.transpose(wt[:, :, ::-1, ::-1], (1, 0, 2, 3))
        return lax.conv_general_dilated(
            x, w_conv, window_strides=(1, 1),
            padding=[(kh - 1 - padding, kh - 1 - padding),
                     (kw - 1 - padding, kw - 1 - padding)],
            lhs_dilation=(stride, stride),
            dimension_numbers=("NCHW", "OIHW", "NCHW"),
            precision=lax.Precision.HIGHEST)

    x = z_latent[:, :, None, None]
    for (wt, g, b, s, p) in block_params:
        y = convt(x, wt, s, p)
        mean = jnp.mean(y, axis=(0, 2, 3), keepdims=True)
        var = jnp.mean((y - mean) ** 2, axis=(0, 2, 3), keepdims=True)
        y = (g.reshape(1, -1, 1, 1) * (y - mean) * lax.rsqrt(var + eps)
             + b.reshape(1, -1, 1, 1))
        x = jnp.where(y >= 0, y, negative_slope * y)
    return jnp.tanh(convt(x, output_weight, 2, 1))


if __name__ == "__main__":
    # Small DCGanGenerator: n_latent=64, channel_sizes=[32, 16], out_channel=3
    #   z (2, 64) -> 4x4x32 -> 8x8x16 -> tanh(16x16x3)
    N, N_LATENT = 2, 64
    CHANNEL_SIZES = (32, 16)
    OUT_CHANNEL = 3

    key = jax.random.PRNGKey(0)
    keys = jax.random.split(key, 3 * len(CHANNEL_SIZES) + 2)
    z = jax.random.normal(keys[0], (N, N_LATENT), dtype=jnp.float32)

    block_params = []
    cin = N_LATENT
    ki = 1
    for li, cout_l in enumerate(CHANNEL_SIZES):
        stride, padding = (1, 0) if li == 0 else (2, 1)
        w = 0.05 * jax.random.normal(keys[ki], (cin, cout_l, 4, 4), jnp.float32)
        g = 1.0 + 0.1 * jax.random.normal(keys[ki + 1], (cout_l,), jnp.float32)
        b = 0.1 * jax.random.normal(keys[ki + 2], (cout_l,), jnp.float32)
        block_params.append((w, g, b, stride, padding))
        cin = cout_l
        ki += 3
    out_w = 0.05 * jax.random.normal(keys[ki], (cin, OUT_CHANNEL, 4, 4),
                                     jnp.float32)

    out = dcgan_generator_forward(z, block_params, out_w)
    out = jax.block_until_ready(out)

    ref = _reference_generator(z, block_params, out_w)
    assert out.shape == (N, OUT_CHANNEL, 16, 16), out.shape
    max_err = float(jnp.max(jnp.abs(out - ref)))
    # bf16 GEMM operands and a bf16 tanh store, compared against a pure-f32
    # reference; values are O(1) after BN so this bound is comfortable.
    assert max_err < 4e-2, max_err
    print("KERNEL_OK")
</pallas_src>

<mosaic_0001>
module attributes {stable_mosaic.version = 11 : i64} {
  func.func @_fused_convt_bn_act_kernel(%arg0: i32, %arg1: i32, %arg2: memref<1x8x64xbf16, #tpu.memory_space<vmem>>, %arg3: memref<1x64x128xbf16, #tpu.memory_space<vmem>>, %arg4: memref<1x128xf32, #tpu.memory_space<vmem>>, %arg5: memref<1x128xf32, #tpu.memory_space<vmem>>, %arg6: memref<16x8x128xbf16, #tpu.memory_space<vmem>>, %arg7: memref<16x8x128xf32, #tpu.memory_space<vmem>>, %arg8: memref<1x128xf32, #tpu.memory_space<vmem>>, %arg9: memref<1x128xf32, #tpu.memory_space<vmem>>) attributes {dimension_semantics = [#tpu.dimension_semantics<arbitrary>, #tpu.dimension_semantics<arbitrary>], iteration_bounds = array<i64: 16, 1>, scalar_prefetch = 0 : i64, scratch_operands = 3 : i64, tpu.core_type = #tpu.core_type<tc>, window_params = [{transform_indices = @transform_0, window_bounds = array<i64: 1, 8, 64>}, {transform_indices = @transform_1, window_bounds = array<i64: 1, 64, 128>}, {pipeline_mode = #tpu.pipeline_mode<synchronous>, transform_indices = @transform_2, window_bounds = array<i64: 1, 128>}, {pipeline_mode = #tpu.pipeline_mode<synchronous>, transform_indices = @transform_3, window_bounds = array<i64: 1, 128>}, {pipeline_mode = #tpu.pipeline_mode<synchronous>, transform_indices = @transform_4, window_bounds = array<i64: 16, 8, 128>}]} {
    %c1_i32 = arith.constant 1 : i32
    %0 = arith.muli %arg0, %c1_i32 : i32
    %1 = arith.addi %0, %arg1 : i32
    %c0_i32 = arith.constant 0 : i32
    %2 = arith.cmpi eq, %1, %c0_i32 : i32
    %3 = arith.extui %2 : i1 to i32
    %c0_i32_0 = arith.constant 0 : i32
    %4 = arith.cmpi ne, %3, %c0_i32_0 : i32
    scf.if %4 {
      %cst_19 = arith.constant 0.000000e+00 : f32
      %28 = vector.broadcast %cst_19 : f32 to vector<1x128xf32>
      %c0_20 = arith.constant 0 : index
      %c0_21 = arith.constant 0 : index
      %29 = vector.load %arg8[%c0_20, %c0_21] : memref<1x128xf32, #tpu.memory_space<vmem>>, vector<1x128xf32>
      tpu.vector_store %arg8[%c0_20, %c0_21], %28 {strides = array<i32>} : memref<1x128xf32, #tpu.memory_space<vmem>>, vector<1x128xf32>,
      %cst_22 = arith.constant 0.000000e+00 : f32
      %30 = vector.broadcast %cst_22 : f32 to vector<1x128xf32>
      %c0_23 = arith.constant 0 : index
      %c0_24 = arith.constant 0 : index
      %31 = vector.load %arg9[%c0_23, %c0_24] : memref<1x128xf32, #tpu.memory_space<vmem>>, vector<1x128xf32>
      tpu.vector_store %arg9[%c0_23, %c0_24], %30 {strides = array<i32>} : memref<1x128xf32, #tpu.memory_space<vmem>>, vector<1x128xf32>,
    } else {
    }
    %c0 = arith.constant 0 : index
    %c0_1 = arith.constant 0 : index
    %c0_2 = arith.constant 0 : index
    %5 = vector.load %arg2[%c0, %c0_1, %c0_2] : memref<1x8x64xbf16, #tpu.memory_space<vmem>>, vector<1x8x64xbf16>
    %6 = vector.shape_cast %5 : vector<1x8x64xbf16> to vector<8x64xbf16>
    %c0_3 = arith.constant 0 : index
    %c0_4 = arith.constant 0 : index
    %c0_5 = arith.constant 0 : index
    %7 = vector.load %arg3[%c0_3, %c0_4, %c0_5] : memref<1x64x128xbf16, #tpu.memory_space<vmem>>, vector<1x64x128xbf16>
    %8 = vector.shape_cast %7 : vector<1x64x128xbf16> to vector<64x128xbf16>
    %cst = arith.constant dense<0.000000e+00> : vector<8x128xf32>
    %9 = tpu.matmul %6, %8, %cst {dimension_numbers = #tpu.dot_dimension_numbers<[1], [0], [0], [1], [0, 0, 1, 1], [], []>} : vector<8x64xbf16>, vector<64x128xbf16>, vector<8x128xf32> -> vector<8x128xf32>
    %10 = arith.index_cast %1 : i32 to index
    %c0_6 = arith.constant 0 : index
    %c0_7 = arith.constant 0 : index
    %11 = vector.load %arg7[%10, %c0_6, %c0_7] : memref<16x8x128xf32, #tpu.memory_space<vmem>>, vector<1x8x128xf32>
    %12 = vector.shape_cast %11 : vector<1x8x128xf32> to vector<8x128xf32>
    %13 = vector.shape_cast %9 : vector<8x128xf32> to vector<1x8x128xf32>
    tpu.vector_store %arg7[%10, %c0_6, %c0_7], %13 {strides = array<i32>} : memref<16x8x128xf32, #tpu.memory_space<vmem>>, vector<1x8x128xf32>,
    %c0_8 = arith.constant 0 : index
    %c0_9 = arith.constant 0 : index
    %14 = vector.load %arg8[%c0_8, %c0_9] : memref<1x128xf32, #tpu.memory_space<vmem>>, vector<1x128xf32>
    %cst_10 = arith.constant dense<0.000000e+00> : vector<128xf32>
    %15 = vector.multi_reduction <add>, %9, %cst_10 [0] : vector<8x128xf32> to vector<128xf32>
    %16 = vector.shape_cast %15 : vector<128xf32> to vector<1x128xf32>
    %17 = arith.addf %14, %16 : vector<1x128xf32>
    %c0_11 = arith.constant 0 : index
    %c0_12 = arith.constant 0 : index
    %18 = vector.load %arg8[%c0_11, %c0_12] : memref<1x128xf32, #tpu.memory_space<vmem>>, vector<1x128xf32>
    tpu.vector_store %arg8[%c0_11, %c0_12], %17 {strides = array<i32>} : memref<1x128xf32, #tpu.memory_space<vmem>>, vector<1x128xf32>,
    %c0_13 = arith.constant 0 : index
    %c0_14 = arith.constant 0 : index
    %19 = vector.load %arg9[%c0_13, %c0_14] : memref<1x128xf32, #tpu.memory_space<vmem>>, vector<1x128xf32>
    %20 = arith.mulf %9, %9 : vector<8x128xf32>
    %cst_15 = arith.constant dense<0.000000e+00> : vector<128xf32>
    %21 = vector.multi_reduction <add>, %20, %cst_15 [0] : vector<8x128xf32> to vector<128xf32>
    %22 = vector.shape_cast %21 : vector<128xf32> to vector<1x128xf32>
    %23 = arith.addf %19, %22 : vector<1x128xf32>
    %c0_16 = arith.constant 0 : index
    %c0_17 = arith.constant 0 : index
    %24 = vector.load %arg9[%c0_16, %c0_17] : memref<1x128xf32, #tpu.memory_space<vmem>>, vector<1x128xf32>
    tpu.vector_store %arg9[%c0_16, %c0_17], %23 {strides = array<i32>} : memref<1x128xf32, #tpu.memory_space<vmem>>, vector<1x128xf32>,
    %c15_i32 = arith.constant 15 : i32
    %25 = arith.cmpi eq, %1, %c15_i32 : i32
    %26 = arith.extui %25 : i1 to i32
    %c0_i32_18 = arith.constant 0 : i32
    %27 = arith.cmpi ne, %26, %c0_i32_18 : i32
    scf.if %27 {
      %c0_19 = arith.constant 0 : index
      %c0_20 = arith.constant 0 : index
      %28 = vector.load %arg8[%c0_19, %c0_20] : memref<1x128xf32, #tpu.memory_space<vmem>>, vector<1x128xf32>
      %cst_21 = arith.constant 3.125000e-02 : f32
      %29 = vector.broadcast %cst_21 : f32 to vector<1x128xf32>
      %30 = arith.mulf %28, %29 : vector<1x128xf32>
      %c0_22 = arith.constant 0 : index
      %c0_23 = arith.constant 0 : index
      %31 = vector.load %arg9[%c0_22, %c0_23] : memref<1x128xf32, #tpu.memory_space<vmem>>, vector<1x128xf32>
      %cst_24 = arith.constant 3.125000e-02 : f32
      %32 = vector.broadcast %cst_24 : f32 to vector<1x128xf32>
      %33 = arith.mulf %31, %32 : vector<1x128xf32>
      %34 = arith.mulf %30, %30 : vector<1x128xf32>
      %35 = arith.subf %33, %34 : vector<1x128xf32>
      %cst_25 = arith.constant 0.000000e+00 : f32
      %36 = vector.broadcast %cst_25 : f32 to vector<1x128xf32>
      %37 = arith.maximumf %35, %36 : vector<1x128xf32>
      %cst_26 = arith.constant 9.99999974E-6 : f32
      %38 = vector.broadcast %cst_26 : f32 to vector<1x128xf32>
      %39 = arith.addf %37, %38 : vector<1x128xf32>
      %40 = math.rsqrt %39 : vector<1x128xf32>
      %c0_27 = arith.constant 0 : index
      %c0_28 = arith.constant 0 : index
      %41 = vector.load %arg4[%c0_27, %c0_28] : memref<1x128xf32, #tpu.memory_space<vmem>>, vector<1x128xf32>
      %42 = arith.mulf %41, %40 : vector<1x128xf32>
      %c0_29 = arith.constant 0 : index
      %c0_30 = arith.constant 0 : index
      %43 = vector.load %arg5[%c0_29, %c0_30] : memref<1x128xf32, #tpu.memory_space<vmem>>, vector<1x128xf32>
      %44 = arith.mulf %30, %42 : vector<1x128xf32>
      %45 = arith.subf %43, %44 : vector<1x128xf32>
      %c0_i32_31 = arith.constant 0 : i32
      %c16_i32 = arith.constant 16 : i32
      %46 = arith.addi %c0_i32_31, %c16_i32 : i32
      %c1_i32_32 = arith.constant 1 : i32
      scf.for %arg10 = %c0_i32_31 to %46 step %c1_i32_32  : i32 {
        %47 = arith.index_cast %arg10 : i32 to index
        %c0_34 = arith.constant 0 : index
        %c0_35 = arith.constant 0 : index
        %48 = vector.load %arg7[%47, %c0_34, %c0_35] : memref<16x8x128xf32, #tpu.memory_space<vmem>>, vector<1x8x128xf32>
        %49 = vector.shape_cast %48 : vector<1x8x128xf32> to vector<8x128xf32>
        %50 = vector.broadcast %42 : vector<1x128xf32> to vector<8x128xf32>
        %51 = arith.mulf %49, %50 : vector<8x128xf32>
        %52 = vector.broadcast %45 : vector<1x128xf32> to vector<8x128xf32>
        %53 = arith.addf %51, %52 : vector<8x128xf32>
        %cst_36 = arith.constant 0.000000e+00 : f32
        %54 = vector.broadcast %cst_36 : f32 to vector<8x128xf32>
        %55 = arith.cmpf oge, %53, %54 : vector<8x128xf32>
        %cst_37 = arith.constant 2.000000e-01 : f32
        %56 = vector.broadcast %cst_37 : f32 to vector<8x128xf32>
        %57 = arith.mulf %56, %53 : vector<8x128xf32>
        %58 = arith.select %55, %53, %57 : vector<8x128xi1>, vector<8x128xf32>
        %59 = arith.truncf %58 : vector<8x128xf32> to vector<8x128xbf16>
        %60 = arith.index_cast %arg10 : i32 to index
        %c0_38 = arith.constant 0 : index
        %c0_39 = arith.constant 0 : index
        %61 = vector.load %arg6[%60, %c0_38, %c0_39] : memref<16x8x128xbf16, #tpu.memory_space<vmem>>, vector<1x8x128xbf16>
        %62 = vector.shape_cast %61 : vector<1x8x128xbf16> to vector<8x128xbf16>
        %63 = vector.shape_cast %59 : vector<8x128xbf16> to vector<1x8x128xbf16>
        tpu.vector_store %arg6[%60, %c0_38, %c0_39], %63 {strides = array<i32>} : memref<16x8x128xbf16, #tpu.memory_space<vmem>>, vector<1x8x128xbf16>,
      }
      %c16_i32_33 = arith.constant 16 : i32
    } else {
    }
    return
  }
  func.func @transform_0(%arg0: i32, %arg1: i32) -> (i32, i32, i32) {
    %c0_i32 = arith.constant 0 : i32
    %c0_i32_0 = arith.constant 0 : i32
    %c0_i32_1 = arith.constant 0 : i32
    return %c0_i32, %arg1, %c0_i32_0 : i32, i32, i32
  }
  func.func @transform_1(%arg0: i32, %arg1: i32) -> (i32, i32, i32) {
    %c0_i32 = arith.constant 0 : i32
    %c0_i32_0 = arith.constant 0 : i32
    %c0_i32_1 = arith.constant 0 : i32
    return %arg0, %c0_i32, %c0_i32_0 : i32, i32, i32
  }
  func.func @transform_2(%arg0: i32, %arg1: i32) -> (i32, i32) {
    %c0_i32 = arith.constant 0 : i32
    %c0_i32_0 = arith.constant 0 : i32
    %c0_i32_1 = arith.constant 0 : i32
    return %c0_i32, %c0_i32_0 : i32, i32
  }
  func.func @transform_3(%arg0: i32, %arg1: i32) -> (i32, i32) {
    %c0_i32 = arith.constant 0 : i32
    %c0_i32_0 = arith.constant 0 : i32
    %c0_i32_1 = arith.constant 0 : i32
    return %c0_i32, %c0_i32_0 : i32, i32
  }
  func.func @transform_4(%arg0: i32, %arg1: i32) -> (i32, i32, i32) {
    %c0_i32 = arith.constant 0 : i32
    %c0_i32_0 = arith.constant 0 : i32
    %c0_i32_1 = arith.constant 0 : i32
    %c0_i32_2 = arith.constant 0 : i32
    return %c0_i32, %c0_i32_0, %c0_i32_1 : i32, i32, i32
  }
}

</mosaic_0001>

<llo_original>
// kernel: tpu_custom_call.1
$region0: #{tpu_custom_call.1}
  #allocation0 [shape = 'u32[]', space=smem, size = 0x4, offset = 0x4, fixed_abs, tag = 'smem constant byte address 0x4 - core index']
  #allocation1 [shape = 'u32[144,128]{1,0:T(1,128)}', space=vmem, size = 0x12000, scoped, tag = 'internal scratch']
  #allocation2 [shape = 'f32[16,8,128]{2,1,0:T(8,128)}', space=vmem, size = 0x10000, scoped, tag = 'scratch operand']
  #allocation3 [shape = 'f32[1,128]{1,0:T(1,128)}', space=vmem, size = 0x200, scoped, tag = 'scratch operand']
  #allocation4 [shape = 'f32[1,128]{1,0:T(1,128)}', space=vmem, size = 0x200, scoped, tag = 'scratch operand']
  %s0 = inlined_call_operand.hbm [shape: bf16[1,8,64], index: 0, kind: input, shape index: {}]
  %s1 = inlined_call_operand.hbm [shape: bf16[16,64,128], index: 1, kind: input, shape index: {}]
  %s2 = inlined_call_operand.vmem [shape: f32[1,128], index: 2, kind: input, shape index: {}]
  %s3 = inlined_call_operand.vmem [shape: f32[1,128], index: 3, kind: input, shape index: {}]
  %s4 = inlined_call_operand.hbm [shape: bf16[16,8,128], index: 4, kind: output, shape index: {}]
  %s5 = sld [smem:[#allocation0]]
  $region72: #{tpu_custom_call.1} parent=0
    _
  %s7 = ssub.s32 1, %s5
  %s8 = scalar_select 0, %s7, %s5
  $region1: #{tpu_custom_call.1} parent=0
    #allocation5 [shape = 'u8[2048]{0}', space=vmem, size = 0x800, scoped, tag = 'input window, operand 0, single buffered']
    #allocation6 [shape = 's32[2]{0}', space=sflag, size = 0x8, scoped, tag = 'scoped memory for tpu_custom_call.1']
    #allocation7 [shape = 's32[2]{0}', space=sflag, size = 0x8, scoped, tag = 'scoped memory for tpu_custom_call.1']
    #allocation8 [shape = 'u8[32768]{0}', space=vmem, size = 0x8000, scoped, tag = 'input window, operand 1']
    #allocation9 [shape = 's32[2]{0}', space=sflag, size = 0x8, scoped, tag = 'scoped memory for tpu_custom_call.1']
    #allocation10 [shape = 'u8[32768]{0}', space=vmem, size = 0x8000, scoped, tag = 'output window, operand 0, single buffered']
    %9 = vsyncpa [#allocation6], 0
    %10 = vsyncpa [#allocation9], 0
    %s11 = scalar_lea.sflag [#allocation9], 1
    %12 = vsyncpa %s11, 0
    %13 = vsyncpa [#allocation7], 0
    loop: start=0, step=1, limit=18
    $region2: #{tpu_custom_call.1} parent=1 // loop_pre_header
      _
    $region3: #{tpu_custom_call.1} parent=1 // loop_header
      %s15 = sphi 0, %s19
      %p16 = scmp.ge.s32.totalorder %s15, 18
      %s22 = sphi 0, %s34
      %s23 = sphi 0, %s30
      %s24 = sphi 0, %s22
      %s25 = sphi 0, %s23
      %s26 = sphi 0, %s24
      %s27 = sphi 0, %s25
      %s37 = sphi 0, %s39
      %s40 = sphi 0, %s37
      %s41 = sphi 0, %s40
      %s57 = sphi 0, %s41
      %s63 = sphi 0, %s65
      %s66 = sphi 0, %s63
      %s67 = sphi 0, %s66
      %s83 = sphi 0, %s67
      %s87 = sphi 0, %s87
      %s89 = sphi 0, %s87
      %s90 = sphi 0, %s89
      %s104 = sphi 0, %s90
      %s108 = sphi 0, %s108
      %s110 = sphi 0, %s108
      %s111 = sphi 0, %s110
      %s125 = sphi 0, %s111
      %s129 = sphi 0, %s129
      %s131 = sphi 0, %s129
      %s132 = sphi 0, %s131
      %s146 = sphi 0, %s132
    $region4: #{tpu_custom_call.1} parent=1 // loop_header_branch
      %18 = sbr.rel (%p16) target = $region8
    $region5: #{tpu_custom_call.1} parent=1 // loop_body
      %s20 = ssub.s32 %s15, 1
      %s21 = ssub.s32 %s15, 2
      %s28 = sadd.s32 1, %s23
      %p29 = scmp.ge.s32.totalorder %s28, 1
      %s30 = scalar_select %p29, 0, %s28
      %s31 = sadd.s32 1, %s22
      %s32 = scalar_select %p29, %s31, %s22
      %p33 = scmp.ge.s32.totalorder %s32, 16
      %s34 = scalar_select %p33, 0, %s32
      %s35 = ssub.s32 %s23, %s30
      %p36 = scmp.eq.s32.totalorder %s35, 0
      %s38 = sadd.s32 %s37, 1
      %s39 = scalar_select %p36, %s37, %s38
      %p42 = pneg %p36
      %p43 = scmp.eq.s32.totalorder %s15, 15
      %p44 = por %p42, %p43
      %p45 = scmp.ne.s32.totalorder %s37, %s40
      %p46 = scmp.eq.s32.totalorder %s15, 0
      %p47 = por %p45, %p46
      %p48 = scmp.ne.s32.totalorder %s37, %s40
      %p49 = scmp.eq.s32.totalorder %s20, 15
      %p50 = por %p48, %p49
      %p51 = scmp.ne.s32.totalorder %s40, %s41
      %p52 = scmp.eq.s32.totalorder %s20, 0
      %p53 = por %p51, %p52
      %p54 = scmp.ne.s32.totalorder %s40, %s41
      %p55 = scmp.eq.s32.totalorder %s21, 15
      %p56 = por %p54, %p55
      %p58 = scmp.ne.s32.totalorder %s41, %s57
      %p59 = scmp.eq.s32.totalorder %s21, 0
      %p60 = por %p58, %p59
      %s61 = ssub.s32 %s22, %s34
      %p62 = scmp.eq.s32.totalorder %s61, 0
      %s64 = sadd.s32 %s63, 1
      %s65 = scalar_select %p62, %s63, %s64
      %p68 = pneg %p62
      %p69 = scmp.eq.s32.totalorder %s15, 15
      %p70 = por %p68, %p69
      %p71 = scmp.ne.s32.totalorder %s63, %s66
      %p72 = scmp.eq.s32.totalorder %s15, 0
      %p73 = por %p71, %p72
      %p74 = scmp.ne.s32.totalorder %s63, %s66
      %p75 = scmp.eq.s32.totalorder %s20, 15
      %p76 = por %p74, %p75
      %p77 = scmp.ne.s32.totalorder %s66, %s67
      %p78 = scmp.eq.s32.totalorder %s20, 0
      %p79 = por %p77, %p78
      %p80 = scmp.ne.s32.totalorder %s66, %s67
      %p81 = scmp.eq.s32.totalorder %s21, 15
      %p82 = por %p80, %p81
      %p84 = scmp.ne.s32.totalorder %s67, %s83
      %p85 = scmp.eq.s32.totalorder %s21, 0
      %p86 = por %p84, %p85
      %s88 = sadd.s32 %s87, 1
      %p91 = scmp.eq.s32.totalorder %s15, 15
      %p92 = scmp.ne.s32.totalorder %s87, %s89
      %p93 = scmp.eq.s32.totalorder %s15, 0
      %p94 = por %p92, %p93
      %p95 = scmp.ne.s32.totalorder %s87, %s89
      %p96 = scmp.eq.s32.totalorder %s20, 15
      %p97 = por %p95, %p96
      %p98 = scmp.ne.s32.totalorder %s89, %s90
      %p99 = scmp.eq.s32.totalorder %s20, 0
      %p100 = por %p98, %p99
      %p101 = scmp.ne.s32.totalorder %s89, %s90
      %p102 = scmp.eq.s32.totalorder %s21, 15
      %p103 = por %p101, %p102
      %p105 = scmp.ne.s32.totalorder %s90, %s104
      %p106 = scmp.eq.s32.totalorder %s21, 0
      %p107 = por %p105, %p106
      %s109 = sadd.s32 %s108, 1
      %p112 = scmp.eq.s32.totalorder %s15, 15
      %p113 = scmp.ne.s32.totalorder %s108, %s110
      %p114 = scmp.eq.s32.totalorder %s15, 0
      %p115 = por %p113, %p114
      %p116 = scmp.ne.s32.totalorder %s108, %s110
      %p117 = scmp.eq.s32.totalorder %s20, 15
      %p118 = por %p116, %p117
      %p119 = scmp.ne.s32.totalorder %s110, %s111
      %p120 = scmp.eq.s32.totalorder %s20, 0
      %p121 = por %p119, %p120
      %p122 = scmp.ne.s32.totalorder %s110, %s111
      %p123 = scmp.eq.s32.totalorder %s21, 15
      %p124 = por %p122, %p123
      %p126 = scmp.ne.s32.totalorder %s111, %s125
      %p127 = scmp.eq.s32.totalorder %s21, 0
      %p128 = por %p126, %p127
      %s130 = sadd.s32 %s129, 1
      %p133 = scmp.eq.s32.totalorder %s15, 15
      %p134 = scmp.ne.s32.totalorder %s129, %s131
      %p135 = scmp.eq.s32.totalorder %s15, 0
      %p136 = por %p134, %p135
      %p137 = scmp.ne.s32.totalorder %s129, %s131
      %p138 = scmp.eq.s32.totalorder %s20, 15
      %p139 = por %p137, %p138
      %p140 = scmp.ne.s32.totalorder %s131, %s132
      %p141 = scmp.eq.s32.totalorder %s20, 0
      %p142 = por %p140, %p141
      %p143 = scmp.ne.s32.totalorder %s131, %s132
      %p144 = scmp.eq.s32.totalorder %s21, 15
      %p145 = por %p143, %p144
      %p147 = scmp.ne.s32.totalorder %s132, %s146
      %p148 = scmp.eq.s32.totalorder %s21, 0
      %p149 = por %p147, %p148
      %p150 = scmp.le.s32.totalorder 1, %s15
      %p151 = scmp.lt.s32.totalorder %s15, 17
      %p152 = pnand %p150, %p151
      %p153 = pneg %p152
      // Predicated region
      $region9: #{tpu_custom_call.1} parent=5 // pred_check
        _
      $region10: #{tpu_custom_call.1} parent=5 // pred_check_branch
        %155 = sbr.rel (%p152) target = $region12
      $region11: #{tpu_custom_call.1} parent=5 // pred_region
        %s156 = ssub.s32 %s15, 1
        // Predicated region
        $region13: #{tpu_custom_call.1} parent=11 // pred_check
          %p157 = pneg %p53
        $region14: #{tpu_custom_call.1} parent=11 // pred_check_branch
          %159 = sbr.rel (%p157) target = $region16
        $region15: #{tpu_custom_call.1} parent=11 // pred_region
          %s161 = ssub.s32 64, 64
          %162 = vsyncadd [#allocation6], %s161
          %s163 = smul.addr %s25, 64
          %s164 = scalar_lea.hbm %s0, %s163
          %s166 = sshll.u32 [#allocation5], 4
          %s167 = int_to_ptr.vmem [resolvable:$true] %s166
          %169 = dma.hbm_to_vmem [thread:$0]  %s164, 64, %s167, [#allocation6]
        $region16: #{tpu_custom_call.1} parent=11 // pred_fallthru
          _
        // Predicated region
        $region17: #{tpu_custom_call.1} parent=11 // pred_check
          %p170 = pneg %p100
        $region18: #{tpu_custom_call.1} parent=11 // pred_check_branch
          %172 = sbr.rel (%p170) target = $region20
        $region19: #{tpu_custom_call.1} parent=11 // pred_region
          _
        $region20: #{tpu_custom_call.1} parent=11 // pred_fallthru
          _
        // Predicated region
        $region21: #{tpu_custom_call.1} parent=11 // pred_check
          %p173 = pneg %p121
        $region22: #{tpu_custom_call.1} parent=11 // pred_check_branch
          %175 = sbr.rel (%p173) target = $region24
        $region23: #{tpu_custom_call.1} parent=11 // pred_region
          _
        $region24: #{tpu_custom_call.1} parent=11 // pred_fallthru
          _
      $region12: #{tpu_custom_call.1} parent=5 // pred_fallthru
        _
      %p176 = scmp.lt.s32.totalorder %s15, 16
      // Predicated region
      $region25: #{tpu_custom_call.1} parent=5 // pred_check
        %p177 = pneg %p176
      $region26: #{tpu_custom_call.1} parent=5 // pred_check_branch
        %179 = sbr.rel (%p177) target = $region28
      $region27: #{tpu_custom_call.1} parent=5 // pred_region
        // Predicated region
        $region29: #{tpu_custom_call.1} parent=27 // pred_check
          %p180 = pneg %p73
        $region30: #{tpu_custom_call.1} parent=27 // pred_check_branch
          %182 = sbr.rel (%p180) target = $region32
        $region31: #{tpu_custom_call.1} parent=27 // pred_region
          %s183 = sand.u32 %s63, 1
          %s184 = scalar_lea.sflag [#allocation9], %s183
          %s185 = sand.u32 %s63, 1
          %s186 = smul.addr %s185, 32
          %s187 = scalar_lea.vmem [#allocation8], %s186
          %s189 = ssub.s32 512, 512
          %190 = vsyncadd %s184, %s189
          %s191 = smul.addr %s22, 8
          %s192 = smul.addr %s191, 64
          %s193 = scalar_lea.hbm %s1, %s192
          %s194 = sshll.u32 %s187, 4
          %s195 = int_to_ptr.vmem [resolvable:$true] %s194
          %200 = dma.hbm_to_vmem [thread:$0]  %s193, 512, %s195, %s184, 64, 64, 4
        $region32: #{tpu_custom_call.1} parent=27 // pred_fallthru
          _
      $region28: #{tpu_custom_call.1} parent=5 // pred_fallthru
        _
      %p201 = scmp.le.s32.totalorder 1, %s15
      %p202 = scmp.lt.s32.totalorder %s15, 17
      %p203 = pnand %p201, %p202
      %p204 = pneg %p203
      // Predicated region
      $region33: #{tpu_custom_call.1} parent=5 // pred_check
        _
      $region34: #{tpu_custom_call.1} parent=5 // pred_check_branch
        %206 = sbr.rel (%p203) target = $region36
      $region35: #{tpu_custom_call.1} parent=5 // pred_region
        %s207 = ssub.s32 %s15, 1
        // Predicated region
        $region37: #{tpu_custom_call.1} parent=35 // pred_check
          %p208 = pneg %p53
        $region38: #{tpu_custom_call.1} parent=35 // pred_check_branch
          %210 = sbr.rel (%p208) target = $region40
        $region39: #{tpu_custom_call.1} parent=35 // pred_region
          %211 = dma.done [#allocation6], 64
        $region40: #{tpu_custom_call.1} parent=35 // pred_fallthru
          _
        %s212 = sand.u32 %s66, 1
        %s213 = scalar_lea.sflag [#allocation9], %s212
        %s214 = sand.u32 %s66, 1
        %s215 = smul.addr %s214, 32
        %s216 = scalar_lea.vmem [#allocation8], %s215
        // Predicated region
        $region41: #{tpu_custom_call.1} parent=35 // pred_check
          %p217 = pneg %p79
        $region42: #{tpu_custom_call.1} parent=35 // pred_check_branch
          %219 = sbr.rel (%p217) target = $region44
        $region43: #{tpu_custom_call.1} parent=35 // pred_region
          %220 = dma.done %s213, 512
        $region44: #{tpu_custom_call.1} parent=35 // pred_fallthru
          _
        %p221 = pneg %p53
        %p222 = pneg %p50
        %s223 = sand.u32 %s66, 1
        %s224 = scalar_lea.sflag [#allocation9], %s223
        %s225 = sand.u32 %s66, 1
        %s226 = smul.addr %s225, 32
        %s227 = scalar_lea.vmem [#allocation8], %s226
        %p228 = pneg %p79
        %p229 = pneg %p76
        %p230 = pneg %p100
        %p231 = pneg %p97
        %p232 = pneg %p121
        %p233 = pneg %p118
        %p234 = pneg %p142
        %p235 = pneg %p139
        %s237 = sadd.s32 %s24, %s25
        %p238 = scmp.eq.s32.totalorder %s237, 0
        // Predicated region
        $region45: #{tpu_custom_call.1} parent=35 // pred_check
          %p239 = pneg %p238
        $region46: #{tpu_custom_call.1} parent=35 // pred_check_branch
          %241 = sbr.rel (%p239) target = $region48
        $region47: #{tpu_custom_call.1} parent=35 // pred_region
          %242 = vst [vmem:[#allocation3] sm:$0x1] 0.0
          %243 = vst [vmem:[#allocation4] sm:$0x1] 0.0
        $region48: #{tpu_custom_call.1} parent=35 // pred_fallthru
          _
        %v244 = vld [vmem:[#allocation5] sm:$0xf]
        %v245 = vld [vmem:[%s216] sm:$0xf]
        %v246 = vld [vmem:[%s216 + $0x4] sm:$0xf]
        %v247 = vld [vmem:[%s216 + $0x8] sm:$0xf]
        %v248 = vld [vmem:[%s216 + $0xc] sm:$0xf]
        %v249 = vld [vmem:[%s216 + $0x10] sm:$0xf]
        %v250 = vld [vmem:[%s216 + $0x14] sm:$0xf]
        %v251 = vld [vmem:[%s216 + $0x18] sm:$0xf]
        %v252 = vld [vmem:[%s216 + $0x1c] sm:$0xf]
        %v261 = vunpack.c.l.b16 %v245
        %v262 = vunpack.c.l.b16 %v246
        %v263 = vunpack.c.l.b16 %v247
        %v264 = vunpack.c.l.b16 %v248
        %v265 = vunpack.c.l.b16 %v249
        %v266 = vunpack.c.l.b16 %v250
        %v267 = vunpack.c.l.b16 %v251
        %v268 = vunpack.c.l.b16 %v252
        %v269 = vpack.c.b16 %v262, %v261
        %v270 = vpack.c.b16 %v264, %v263
        %v271 = vpack.c.b16 %v266, %v265
        %v272 = vpack.c.b16 %v268, %v267
        %vm277 = vcmask 523264
        %v279 = vsel %vm277, %v244, 0
        %281 = vmatprep.subr.bf16.mxu0 0
        %282 = vmatpush1.bf16.msra.mxu0 %v269
        %283 = vmatprep.subr.bf16.mxu0 0
        %284 = vmatpush1.bf16.msra.mxu0 %v270
        %285 = vmatprep.subr.bf16.mxu0 0
        %286 = vmatpush1.bf16.msra.mxu0 %v271
        %287 = vmatprep.subr.bf16.mxu0 0
        %288 = vmatpush1.bf16.msra.mxu0 %v272
        %289 = vmatprep.subr.bf16.mxu0 0
        %290 = vmatpush1.bf16.msra.mxu0 0
        %291 = vmatprep.subr.bf16.mxu0 0
        %292 = vmatpush1.bf16.msra.mxu0 0
        %293 = vmatprep.subr.bf16.mxu0 0
        %294 = vmatpush1.bf16.msra.mxu0 0
        %295 = vmatprep.subr.bf16.mxu0 0
        %296 = vmatpush1.bf16.msra.mxu0 0
        %297 = vmatprep.subr.bf16.mxu0 0
        %298 = vmatpush1.bf16.msra.mxu0 0
        %299 = vmatprep.subr.bf16.mxu0 0
        %300 = vmatpush1.bf16.msra.mxu0 0
        %301 = vmatprep.subr.bf16.mxu0 0
        %302 = vmatpush1.bf16.msra.mxu0 0
        %303 = vmatprep.subr.bf16.mxu0 0
        %304 = vmatpush1.bf16.msra.mxu0 0
        %305 = vmatprep.subr.bf16.mxu0 0
        %306 = vmatpush1.bf16.msra.mxu0 0
        %307 = vmatprep.subr.bf16.mxu0 0
        %308 = vmatpush1.bf16.msra.mxu0 0
        %309 = vmatprep.subr.bf16.mxu0 0
        %310 = vmatpush1.bf16.msra.mxu0 0
        %311 = vmatprep.subr.bf16.mxu0 0
        %312 = vmatpush1.bf16.msra.mxu0 0
        %313 = vmatprep.mubr.bf16.mxu0 0
        %314 = vmatmul.mubr.bf16.gmra.mrb[0].mxu0 %v279
        %v315 = vpop.f32.mrb[0].mxu0
        %v316 = vadd.f32 0.0, %v315
        %v317 = vpop.f32.mrb[0].mxu0
        %v318 = vpop.f32.mrb[0].mxu0
        %v319 = vpop.f32.mrb[0].mxu0
        %320 = vdwg.mxu0
        %s321 = smul.u32 %s237, 8
        %s322 = scalar_lea.vmem [#allocation2], %s321
        %323 = vst [vmem:[%s322] sm:$0xff] %v316
        %v324 = vld [vmem:[#allocation3] sm:$0x1]
        %v325 = vrot.slane %v316, 4
        %v326 = vadd.f32 %v316, %v325
        %v327 = vrot.slane %v326, 2
        %v328 = vadd.f32 %v326, %v327
        %v329 = vrot.slane %v328, 1
        %v330 = vadd.f32 %v328, %v329
        %v331 = vadd.f32 %v324, %v330
        %332 = vst [vmem:[#allocation3] sm:$0x1] %v331
        %v333 = vld [vmem:[#allocation4] sm:$0x1]
        %v334 = vmul.f32 %v316, %v316
        %v335 = vrot.slane %v334, 4
        %v336 = vadd.f32 %v334, %v335
        %v337 = vrot.slane %v336, 2
        %v338 = vadd.f32 %v336, %v337
        %v339 = vrot.slane %v338, 1
        %v340 = vadd.f32 %v338, %v339
        %v341 = vadd.f32 %v333, %v340
        %342 = vst [vmem:[#allocation4] sm:$0x1] %v341
        %p343 = scmp.eq.s32.totalorder %s237, 15
        // Predicated region
        $region49: #{tpu_custom_call.1} parent=35 // pred_check
          %p344 = pneg %p343
        $region50: #{tpu_custom_call.1} parent=35 // pred_check_branch
          %346 = sbr.rel (%p344) target = $region52
        $region51: #{tpu_custom_call.1} parent=35 // pred_region
          %v347 = vld [vmem:[#allocation3] sm:$0x1]
          %v348 = vmul.f32 %v347, 0.03125
          %v349 = vld [vmem:[#allocation4] sm:$0x1]
          %v350 = vmul.f32 %v349, 0.03125
          %v351 = vmul.f32 %v348, %v348
          %v352 = vsub.f32 %v350, %v351
          %v353 = vmax.f32 %v352, 0.0
          %v354 = vadd.f32 %v353, 1e-05
          %v355 = vrsqrt.pop %v354
          %v356 = vld [vmem:[%s2] sm:$0x1]
          %v357 = vmul.f32 %v356, %v355
          %v358 = vld [vmem:[%s3] sm:$0x1]
          %v359 = vmul.f32 %v348, %v357
          %v360 = vsub.f32 %v358, %v359
          loop: start=0, step=1, limit=16
          $region53: #{tpu_custom_call.1} parent=51 // loop_pre_header
            _
          $region54: #{tpu_custom_call.1} parent=51 // loop_header
            %s362 = sphi 0, %s366
            %p363 = scmp.ge.s32.totalorder %s362, 16
          $region55: #{tpu_custom_call.1} parent=51 // loop_header_branch
            %365 = sbr.rel (%p363) target = $region59
          $region56: #{tpu_custom_call.1} parent=51 // loop_body
            %s367 = smul.u32 %s362, 8
            %s368 = scalar_lea.vmem [#allocation2], %s367
            %v369 = vld [vmem:[%s368] sm:$0xff]
            %v371 = vlaneseq
            %v372 = vshrl.u32 %v371, 7
            %v373 = vsub.s32 0, %v372
            %v374 = vrot.slane %v357, %v373
            %v376 = vmul.f32 %v369, %v374
            %v378 = vlaneseq
            %v379 = vshrl.u32 %v378, 7
            %v380 = vsub.s32 0, %v379
            %v381 = vrot.slane %v360, %v380
            %v383 = vadd.f32 %v376, %v381
            %vm384 = vcmp.ge.f32.partialorder %v383, 0.0
            %v385 = vmul.f32 %v383, 0.2
            %v386 = vsel %vm384, %v383, %v385
            %v387 = vpack.c.bf16 %v386, %v386
            %s388 = smul.addr %s362, 4
            %s389 = scalar_lea.vmem [#allocation10], %s388
            %390 = vst [vmem:[%s389] sm:$0xf] %v387
          $region57: #{tpu_custom_call.1} parent=51 // loop_footer
            %s366 = sadd.s32 1, %s362
          $region58: #{tpu_custom_call.1} parent=51 // loop_footer_branch
            %361 = sbr.rel target = $region54
          $region59: #{tpu_custom_call.1} parent=51 // loop_exit
            _
        $region52: #{tpu_custom_call.1} parent=35 // pred_fallthru
          _
        // Predicated region
        $region60: #{tpu_custom_call.1} parent=35 // pred_check
          %p391 = pneg %p139
        $region61: #{tpu_custom_call.1} parent=35 // pred_check_branch
          %393 = sbr.rel (%p391) target = $region63
        $region62: #{tpu_custom_call.1} parent=35 // pred_region
          %s395 = ssub.s32 1024, 1024
          %396 = vsyncadd [#allocation7], %s395
          %s397 = sshll.u32 [#allocation10], 4
          %s398 = int_to_ptr.vmem [resolvable:$true] %s397
          %403 = dma.vmem_to_hbm [thread:$0]  %s398, 1024, %s4, [#allocation7], 64, 64, 4
        $region63: #{tpu_custom_call.1} parent=35 // pred_fallthru
          _
        // Predicated region
        $region64: #{tpu_custom_call.1} parent=35 // pred_check
          %p404 = pneg %p139
        $region65: #{tpu_custom_call.1} parent=35 // pred_check_branch
          %406 = sbr.rel (%p404) target = $region67
        $region66: #{tpu_custom_call.1} parent=35 // pred_region
          %407 = dma.done [#allocation7], 1024
        $region67: #{tpu_custom_call.1} parent=35 // pred_fallthru
          _
      $region36: #{tpu_custom_call.1} parent=5 // pred_fallthru
        _
      %p408 = scmp.le.s32.totalorder 2, %s15
      // Predicated region
      $region68: #{tpu_custom_call.1} parent=5 // pred_check
        %p409 = pneg %p408
      $region69: #{tpu_custom_call.1} parent=5 // pred_check_branch
        %411 = sbr.rel (%p409) target = $region71
      $region70: #{tpu_custom_call.1} parent=5 // pred_region
        %s412 = ssub.s32 %s15, 2
      $region71: #{tpu_custom_call.1} parent=5 // pred_fallthru
        _
    $region6: #{tpu_custom_call.1} parent=1 // loop_footer
      %s19 = sadd.s32 1, %s15
    $region7: #{tpu_custom_call.1} parent=1 // loop_footer_branch
      %14 = sbr.rel target = $region3
    $region8: #{tpu_custom_call.1} parent=1 // loop_exit
      _
    %413 = vsyncpa [#allocation6], 1
    %s414 = scalar_lea.sflag [#allocation6], 1
    %415 = vsyncpa %s414, 1
    %416 = vsyncpa [#allocation9], 1
    %s417 = scalar_lea.sflag [#allocation9], 1
    %418 = vsyncpa %s417, 1
    %419 = vsyncpa [#allocation7], 1
    %s420 = scalar_lea.sflag [#allocation7], 1
    %421 = vsyncpa %s420, 1

</llo_original>
